<compile_context>
chip_gen: v6e
topology: v6e:2x2x1
jax: 0.10.0
libtpu: 0.0.40
codegen_flags: <defaults>
</compile_context>

<pallas_src>
import functools

import jax
import jax.numpy as jnp
from jax.experimental import pallas as pl
from jax.experimental.pallas import tpu as pltpu

LANE = 128


def _round_up(n, m):
    return (n + m - 1) // m * m


def lstm_kernel(x_ref, wih_ref, whh_ref, b_ref, wlin_ref, blin_ref,
                out_ref, xp_ref):
    T, B, I = x_ref.shape
    Hp, Gp = whh_ref.shape          # Gp == 4 * Hp (lane-dense fused gate axis)

    # ---- Hoisted, non-recurrent input projection (+ combined bias). --------
    if I == 1:
        # (T, B, 1) * (1, 1, Gp): outer product done as a VPU broadcast
        # multiply -- no degenerate K=1 MXU matmul.
        xp = x_ref[...] * wih_ref[...][None]
    else:
        xp = jnp.dot(x_ref[...].reshape(T * B, I), wih_ref[...],
                     preferred_element_type=jnp.float32).reshape(T, B, Gp)
    xp_ref[...] = xp + b_ref[...]   # bias broadcast happens once, not per step

    whh = whh_ref[...]              # (Hp, Gp), loop-invariant, hoisted

    def step(t, carry):
        h, c = carry
        # Single fused gate matmul per step: (B, Hp) @ (Hp, 4*Hp).
        gates = xp_ref[t] + jnp.dot(h, whh, preferred_element_type=jnp.float32)
        i_g = jax.nn.sigmoid(gates[:, 0 * Hp:1 * Hp])
        f_g = jax.nn.sigmoid(gates[:, 1 * Hp:2 * Hp])
        g_g = jnp.tanh(gates[:, 2 * Hp:3 * Hp])
        o_g = jax.nn.sigmoid(gates[:, 3 * Hp:4 * Hp])
        c_new = f_g * c + i_g * g_g
        h_new = o_g * jnp.tanh(c_new)
        return h_new, c_new

    h0 = jnp.zeros((B, Hp), jnp.float32)
    c0 = jnp.zeros((B, Hp), jnp.float32)
    h_last, _ = jax.lax.fori_loop(0, T, step, (h0, c0), unroll=True)

    # Fused final Linear on the last hidden state (lane-padded output).
    out_ref[...] = (jnp.dot(h_last, wlin_ref[...],
                            preferred_element_type=jnp.float32)
                    + blin_ref[...]).astype(out_ref.dtype)


@functools.partial(jax.jit, static_argnames=("output_dim",))
def lstm_model_forward(x, w_ih, w_hh, b, w_lin, b_lin, *, output_dim=1):
    """x: (B, T, I) float32. Returns (B, output_dim) = Linear(last hidden)."""
    B, T, I = x.shape
    Hp, Gp = w_hh.shape
    Op = w_lin.shape[-1]
    x_tbi = jnp.transpose(x, (1, 0, 2))   # time-major (T, B, I) for the recurrence

    out_pad = pl.pallas_call(
        lstm_kernel,
        out_shape=jax.ShapeDtypeStruct((B, Op), jnp.float32),
        grid_spec=pltpu.PrefetchScalarGridSpec(
            num_scalar_prefetch=0,
            grid=(1,),                     # whole recurrence in one invocation
            in_specs=[
                pl.BlockSpec((T, B, I), lambda i: (0, 0, 0)),   # x (time-major)
                pl.BlockSpec((I, Gp), lambda i: (0, 0)),        # W_ih (fused gates)
                pl.BlockSpec((Hp, Gp), lambda i: (0, 0)),       # W_hh (fused gates)
                pl.BlockSpec((1, Gp), lambda i: (0, 0)),        # b_ih + b_hh
                pl.BlockSpec((Hp, Op), lambda i: (0, 0)),       # linear weight
                pl.BlockSpec((1, Op), lambda i: (0, 0)),        # linear bias
            ],
            out_specs=pl.BlockSpec((B, Op), lambda i: (0, 0)),
            scratch_shapes=[
                pltpu.VMEM((T, B, Gp), jnp.float32),   # hoisted x-projection
            ],
        ),
        compiler_params=pltpu.CompilerParams(
            dimension_semantics=("arbitrary",)),       # serial recurrence
    )(x_tbi, w_ih, w_hh, b, w_lin, b_lin)
    return out_pad[:, :output_dim]


def make_params(key, input_dim, hidden_dim, output_dim):
    """Deterministic params, PyTorch-style uniform(-1/sqrt(H), 1/sqrt(H)).

    Returns (pt, kern): PyTorch-layout tensors (for the reference) and
    gate-fused, lane-padded, right-multiply kernel-layout tensors.
    """
    ks = jax.random.split(key, 6)
    H, I, O = hidden_dim, input_dim, output_dim
    bound = 1.0 / jnp.sqrt(H)
    # PyTorch-layout tensors (gate order i, f, g, o).
    w_ih_pt = jax.random.uniform(ks[0], (4 * H, I), jnp.float32, -bound, bound)
    w_hh_pt = jax.random.uniform(ks[1], (4 * H, H), jnp.float32, -bound, bound)
    b_ih = jax.random.uniform(ks[2], (4 * H,), jnp.float32, -bound, bound)
    b_hh = jax.random.uniform(ks[3], (4 * H,), jnp.float32, -bound, bound)
    w_lin_pt = jax.random.uniform(ks[4], (O, H), jnp.float32, -bound, bound)
    b_lin = jax.random.uniform(ks[5], (O,), jnp.float32, -bound, bound)

    # Kernel layout: each gate gets a 32-lane slot -> fused gate axis = 128.
    Hp = _round_up(H, LANE // 4)
    Gp = 4 * Hp
    Op = _round_up(O, LANE)

    w_ih_g = w_ih_pt.reshape(4, H, I)
    w_hh_g = w_hh_pt.reshape(4, H, H)
    b_g = (b_ih + b_hh).reshape(4, H)

    w_ih_k = jnp.zeros((I, Gp), jnp.float32)
    w_hh_k = jnp.zeros((Hp, Gp), jnp.float32)
    b_k = jnp.zeros((1, Gp), jnp.float32)
    for g in range(4):
        w_ih_k = w_ih_k.at[:, g * Hp:g * Hp + H].set(w_ih_g[g].T)
        w_hh_k = w_hh_k.at[:H, g * Hp:g * Hp + H].set(w_hh_g[g].T)
        b_k = b_k.at[0, g * Hp:g * Hp + H].set(b_g[g])

    w_lin_k = jnp.zeros((Hp, Op), jnp.float32).at[:H, :O].set(w_lin_pt.T)
    b_lin_k = jnp.zeros((1, Op), jnp.float32).at[0, :O].set(b_lin)

    pt = dict(w_ih_pt=w_ih_pt, w_hh_pt=w_hh_pt, b_ih=b_ih, b_hh=b_hh,
              w_lin_pt=w_lin_pt, b_lin=b_lin)
    kern = dict(w_ih=w_ih_k, w_hh=w_hh_k, b=b_k, w_lin=w_lin_k, b_lin=b_lin_k)
    return pt, kern


def lstm_ref(x, pt, hidden_dim):
    """Pure-JAX reference matching torch.nn.LSTM + Linear semantics."""
    B, T, I = x.shape
    H = hidden_dim
    h = jnp.zeros((B, H), jnp.float32)
    c = jnp.zeros((B, H), jnp.float32)
    for t in range(T):
        gates = (x[:, t, :] @ pt["w_ih_pt"].T + pt["b_ih"]
                 + h @ pt["w_hh_pt"].T + pt["b_hh"])
        i = jax.nn.sigmoid(gates[:, 0:H])
        f = jax.nn.sigmoid(gates[:, H:2 * H])
        g = jnp.tanh(gates[:, 2 * H:3 * H])
        o = jax.nn.sigmoid(gates[:, 3 * H:4 * H])
        c = f * c + i * g
        h = o * jnp.tanh(c)
    return h @ pt["w_lin_pt"].T + pt["b_lin"]


if __name__ == "__main__":
    hidden_dim = 20
    input_dim = 1
    output_dim = 1
    batch = 2
    seq = 8

    key = jax.random.PRNGKey(0)
    k_x, k_p = jax.random.split(key)
    x = jax.random.normal(k_x, (batch, seq, input_dim), jnp.float32)

    pt_params, kern_params = make_params(k_p, input_dim, hidden_dim, output_dim)

    out = lstm_model_forward(x, kern_params["w_ih"], kern_params["w_hh"],
                             kern_params["b"], kern_params["w_lin"],
                             kern_params["b_lin"], output_dim=output_dim)
    out = jax.block_until_ready(out)

    ref = lstm_ref(x, pt_params, hidden_dim)
    assert out.shape == (batch, output_dim)
    assert jnp.allclose(out, ref, atol=1e-5, rtol=1e-5), (out, ref)

    print("KERNEL_OK")
</pallas_src>

<mosaic_0001>
module attributes {stable_mosaic.version = 11 : i64} {
  func.func @lstm_kernel(%arg0: i32, %arg1: memref<8x2x1xf32, #tpu.memory_space<vmem>>, %arg2: memref<1x128xf32, #tpu.memory_space<vmem>>, %arg3: memref<32x128xf32, #tpu.memory_space<vmem>>, %arg4: memref<1x128xf32, #tpu.memory_space<vmem>>, %arg5: memref<32x128xf32, #tpu.memory_space<vmem>>, %arg6: memref<1x128xf32, #tpu.memory_space<vmem>>, %arg7: memref<2x128xf32, #tpu.memory_space<vmem>>, %arg8: memref<8x2x128xf32, #tpu.memory_space<vmem>>) attributes {dimension_semantics = [#tpu.dimension_semantics<arbitrary>], iteration_bounds = array<i64: 1>, scalar_prefetch = 0 : i64, scratch_operands = 1 : i64, tpu.core_type = #tpu.core_type<tc>, window_params = [{pipeline_mode = #tpu.pipeline_mode<synchronous>, transform_indices = @transform_0, window_bounds = array<i64: 8, 2, 1>}, {pipeline_mode = #tpu.pipeline_mode<synchronous>, transform_indices = @transform_1, window_bounds = array<i64: 1, 128>}, {pipeline_mode = #tpu.pipeline_mode<synchronous>, transform_indices = @transform_2, window_bounds = array<i64: 32, 128>}, {pipeline_mode = #tpu.pipeline_mode<synchronous>, transform_indices = @transform_3, window_bounds = array<i64: 1, 128>}, {pipeline_mode = #tpu.pipeline_mode<synchronous>, transform_indices = @transform_4, window_bounds = array<i64: 32, 128>}, {pipeline_mode = #tpu.pipeline_mode<synchronous>, transform_indices = @transform_5, window_bounds = array<i64: 1, 128>}, {pipeline_mode = #tpu.pipeline_mode<synchronous>, transform_indices = @transform_6, window_bounds = array<i64: 2, 128>}]} {
    %c0 = arith.constant 0 : index
    %c0_0 = arith.constant 0 : index
    %c0_1 = arith.constant 0 : index
    %0 = vector.load %arg1[%c0, %c0_0, %c0_1] : memref<8x2x1xf32, #tpu.memory_space<vmem>>, vector<8x2x1xf32>
    %c0_2 = arith.constant 0 : index
    %c0_3 = arith.constant 0 : index
    %1 = vector.load %arg2[%c0_2, %c0_3] : memref<1x128xf32, #tpu.memory_space<vmem>>, vector<1x128xf32>
    %2 = vector.shape_cast %1 : vector<1x128xf32> to vector<1x1x128xf32>
    %3 = vector.broadcast %0 : vector<8x2x1xf32> to vector<8x2x128xf32>
    %4 = vector.broadcast %2 : vector<1x1x128xf32> to vector<8x2x128xf32>
    %5 = arith.mulf %3, %4 : vector<8x2x128xf32>
    %c0_4 = arith.constant 0 : index
    %c0_5 = arith.constant 0 : index
    %6 = vector.load %arg4[%c0_4, %c0_5] : memref<1x128xf32, #tpu.memory_space<vmem>>, vector<1x128xf32>
    %7 = vector.shape_cast %6 : vector<1x128xf32> to vector<1x1x128xf32>
    %8 = vector.broadcast %7 : vector<1x1x128xf32> to vector<8x2x128xf32>
    %9 = arith.addf %5, %8 : vector<8x2x128xf32>
    %c0_6 = arith.constant 0 : index
    %c0_7 = arith.constant 0 : index
    %c0_8 = arith.constant 0 : index
    %10 = vector.load %arg8[%c0_6, %c0_7, %c0_8] : memref<8x2x128xf32, #tpu.memory_space<vmem>>, vector<8x2x128xf32>
    tpu.vector_store %arg8[%c0_6, %c0_7, %c0_8], %9 {strides = array<i32>} : memref<8x2x128xf32, #tpu.memory_space<vmem>>, vector<8x2x128xf32>,
    %c0_9 = arith.constant 0 : index
    %c0_10 = arith.constant 0 : index
    %11 = vector.load %arg3[%c0_9, %c0_10] : memref<32x128xf32, #tpu.memory_space<vmem>>, vector<32x128xf32>
    %cst = arith.constant 0.000000e+00 : f32
    %12 = vector.broadcast %cst : f32 to vector<2x32xf32>
    %cst_11 = arith.constant 0.000000e+00 : f32
    %13 = vector.broadcast %cst_11 : f32 to vector<2x32xf32>
    %c0_i32 = arith.constant 0 : i32
    %14 = arith.index_cast %c0_i32 : i32 to index
    %c0_12 = arith.constant 0 : index
    %c0_13 = arith.constant 0 : index
    %15 = vector.load %arg8[%14, %c0_12, %c0_13] : memref<8x2x128xf32, #tpu.memory_space<vmem>>, vector<1x2x128xf32>
    %16 = vector.shape_cast %15 : vector<1x2x128xf32> to vector<2x128xf32>
    %cst_14 = arith.constant dense<0.000000e+00> : vector<2x128xf32>
    %17 = tpu.matmul %12, %11, %cst_14 {dimension_numbers = #tpu.dot_dimension_numbers<[1], [0], [0], [1], [0, 0, 1, 1], [], []>} : vector<2x32xf32>, vector<32x128xf32>, vector<2x128xf32> -> vector<2x128xf32>
    %18 = arith.addf %16, %17 : vector<2x128xf32>
    %19 = vector.extract_strided_slice %18 {offsets = [0, 0], sizes = [2, 32], strides = [1, 1]} : vector<2x128xf32> to vector<2x32xf32>
    %20 = arith.negf %19 : vector<2x32xf32>
    %21 = math.exp %20 : vector<2x32xf32>
    %cst_15 = arith.constant 1.000000e+00 : f32
    %22 = vector.broadcast %cst_15 : f32 to vector<2x32xf32>
    %23 = arith.addf %22, %21 : vector<2x32xf32>
    %24 = arith.divf %22, %23 : vector<2x32xf32>
    %25 = vector.extract_strided_slice %18 {offsets = [0, 32], sizes = [2, 32], strides = [1, 1]} : vector<2x128xf32> to vector<2x32xf32>
    %26 = arith.negf %25 : vector<2x32xf32>
    %27 = math.exp %26 : vector<2x32xf32>
    %cst_16 = arith.constant 1.000000e+00 : f32
    %28 = vector.broadcast %cst_16 : f32 to vector<2x32xf32>
    %29 = arith.addf %28, %27 : vector<2x32xf32>
    %30 = arith.divf %28, %29 : vector<2x32xf32>
    %31 = vector.extract_strided_slice %18 {offsets = [0, 64], sizes = [2, 32], strides = [1, 1]} : vector<2x128xf32> to vector<2x32xf32>
    %32 = math.tanh %31 : vector<2x32xf32>
    %33 = vector.extract_strided_slice %18 {offsets = [0, 96], sizes = [2, 32], strides = [1, 1]} : vector<2x128xf32> to vector<2x32xf32>
    %34 = arith.negf %33 : vector<2x32xf32>
    %35 = math.exp %34 : vector<2x32xf32>
    %cst_17 = arith.constant 1.000000e+00 : f32
    %36 = vector.broadcast %cst_17 : f32 to vector<2x32xf32>
    %37 = arith.addf %36, %35 : vector<2x32xf32>
    %38 = arith.divf %36, %37 : vector<2x32xf32>
    %39 = arith.mulf %30, %13 : vector<2x32xf32>
    %40 = arith.mulf %24, %32 : vector<2x32xf32>
    %41 = arith.addf %39, %40 : vector<2x32xf32>
    %42 = math.tanh %41 : vector<2x32xf32>
    %43 = arith.mulf %38, %42 : vector<2x32xf32>
    %c1_i32 = arith.constant 1 : i32
    %44 = arith.index_cast %c1_i32 : i32 to index
    %c0_18 = arith.constant 0 : index
    %c0_19 = arith.constant 0 : index
    %45 = vector.load %arg8[%44, %c0_18, %c0_19] : memref<8x2x128xf32, #tpu.memory_space<vmem>>, vector<1x2x128xf32>
    %46 = vector.shape_cast %45 : vector<1x2x128xf32> to vector<2x128xf32>
    %cst_20 = arith.constant dense<0.000000e+00> : vector<2x128xf32>
    %47 = tpu.matmul %43, %11, %cst_20 {dimension_numbers = #tpu.dot_dimension_numbers<[1], [0], [0], [1], [0, 0, 1, 1], [], []>} : vector<2x32xf32>, vector<32x128xf32>, vector<2x128xf32> -> vector<2x128xf32>
    %48 = arith.addf %46, %47 : vector<2x128xf32>
    %49 = vector.extract_strided_slice %48 {offsets = [0, 0], sizes = [2, 32], strides = [1, 1]} : vector<2x128xf32> to vector<2x32xf32>
    %50 = arith.negf %49 : vector<2x32xf32>
    %51 = math.exp %50 : vector<2x32xf32>
    %cst_21 = arith.constant 1.000000e+00 : f32
    %52 = vector.broadcast %cst_21 : f32 to vector<2x32xf32>
    %53 = arith.addf %52, %51 : vector<2x32xf32>
    %54 = arith.divf %52, %53 : vector<2x32xf32>
    %55 = vector.extract_strided_slice %48 {offsets = [0, 32], sizes = [2, 32], strides = [1, 1]} : vector<2x128xf32> to vector<2x32xf32>
    %56 = arith.negf %55 : vector<2x32xf32>
    %57 = math.exp %56 : vector<2x32xf32>
    %cst_22 = arith.constant 1.000000e+00 : f32
    %58 = vector.broadcast %cst_22 : f32 to vector<2x32xf32>
    %59 = arith.addf %58, %57 : vector<2x32xf32>
    %60 = arith.divf %58, %59 : vector<2x32xf32>
    %61 = vector.extract_strided_slice %48 {offsets = [0, 64], sizes = [2, 32], strides = [1, 1]} : vector<2x128xf32> to vector<2x32xf32>
    %62 = math.tanh %61 : vector<2x32xf32>
    %63 = vector.extract_strided_slice %48 {offsets = [0, 96], sizes = [2, 32], strides = [1, 1]} : vector<2x128xf32> to vector<2x32xf32>
    %64 = arith.negf %63 : vector<2x32xf32>
    %65 = math.exp %64 : vector<2x32xf32>
    %cst_23 = arith.constant 1.000000e+00 : f32
    %66 = vector.broadcast %cst_23 : f32 to vector<2x32xf32>
    %67 = arith.addf %66, %65 : vector<2x32xf32>
    %68 = arith.divf %66, %67 : vector<2x32xf32>
    %69 = arith.mulf %60, %41 : vector<2x32xf32>
    %70 = arith.mulf %54, %62 : vector<2x32xf32>
    %71 = arith.addf %69, %70 : vector<2x32xf32>
    %72 = math.tanh %71 : vector<2x32xf32>
    %73 = arith.mulf %68, %72 : vector<2x32xf32>
    %c2_i32 = arith.constant 2 : i32
    %74 = arith.index_cast %c2_i32 : i32 to index
    %c0_24 = arith.constant 0 : index
    %c0_25 = arith.constant 0 : index
    %75 = vector.load %arg8[%74, %c0_24, %c0_25] : memref<8x2x128xf32, #tpu.memory_space<vmem>>, vector<1x2x128xf32>
    %76 = vector.shape_cast %75 : vector<1x2x128xf32> to vector<2x128xf32>
    %cst_26 = arith.constant dense<0.000000e+00> : vector<2x128xf32>
    %77 = tpu.matmul %73, %11, %cst_26 {dimension_numbers = #tpu.dot_dimension_numbers<[1], [0], [0], [1], [0, 0, 1, 1], [], []>} : vector<2x32xf32>, vector<32x128xf32>, vector<2x128xf32> -> vector<2x128xf32>
    %78 = arith.addf %76, %77 : vector<2x128xf32>
    %79 = vector.extract_strided_slice %78 {offsets = [0, 0], sizes = [2, 32], strides = [1, 1]} : vector<2x128xf32> to vector<2x32xf32>
    %80 = arith.negf %79 : vector<2x32xf32>
    %81 = math.exp %80 : vector<2x32xf32>
    %cst_27 = arith.constant 1.000000e+00 : f32
    %82 = vector.broadcast %cst_27 : f32 to vector<2x32xf32>
    %83 = arith.addf %82, %81 : vector<2x32xf32>
    %84 = arith.divf %82, %83 : vector<2x32xf32>
    %85 = vector.extract_strided_slice %78 {offsets = [0, 32], sizes = [2, 32], strides = [1, 1]} : vector<2x128xf32> to vector<2x32xf32>
    %86 = arith.negf %85 : vector<2x32xf32>
    %87 = math.exp %86 : vector<2x32xf32>
    %cst_28 = arith.constant 1.000000e+00 : f32
    %88 = vector.broadcast %cst_28 : f32 to vector<2x32xf32>
    %89 = arith.addf %88, %87 : vector<2x32xf32>
    %90 = arith.divf %88, %89 : vector<2x32xf32>
    %91 = vector.extract_strided_slice %78 {offsets = [0, 64], sizes = [2, 32], strides = [1, 1]} : vector<2x128xf32> to vector<2x32xf32>
    %92 = math.tanh %91 : vector<2x32xf32>
    %93 = vector.extract_strided_slice %78 {offsets = [0, 96], sizes = [2, 32], strides = [1, 1]} : vector<2x128xf32> to vector<2x32xf32>
    %94 = arith.negf %93 : vector<2x32xf32>
    %95 = math.exp %94 : vector<2x32xf32>
    %cst_29 = arith.constant 1.000000e+00 : f32
    %96 = vector.broadcast %cst_29 : f32 to vector<2x32xf32>
    %97 = arith.addf %96, %95 : vector<2x32xf32>
    %98 = arith.divf %96, %97 : vector<2x32xf32>
    %99 = arith.mulf %90, %71 : vector<2x32xf32>
    %100 = arith.mulf %84, %92 : vector<2x32xf32>
    %101 = arith.addf %99, %100 : vector<2x32xf32>
    %102 = math.tanh %101 : vector<2x32xf32>
    %103 = arith.mulf %98, %102 : vector<2x32xf32>
    %c3_i32 = arith.constant 3 : i32
    %104 = arith.index_cast %c3_i32 : i32 to index
    %c0_30 = arith.constant 0 : index
    %c0_31 = arith.constant 0 : index
    %105 = vector.load %arg8[%104, %c0_30, %c0_31] : memref<8x2x128xf32, #tpu.memory_space<vmem>>, vector<1x2x128xf32>
    %106 = vector.shape_cast %105 : vector<1x2x128xf32> to vector<2x128xf32>
    %cst_32 = arith.constant dense<0.000000e+00> : vector<2x128xf32>
    %107 = tpu.matmul %103, %11, %cst_32 {dimension_numbers = #tpu.dot_dimension_numbers<[1], [0], [0], [1], [0, 0, 1, 1], [], []>} : vector<2x32xf32>, vector<32x128xf32>, vector<2x128xf32> -> vector<2x128xf32>
    %108 = arith.addf %106, %107 : vector<2x128xf32>
    %109 = vector.extract_strided_slice %108 {offsets = [0, 0], sizes = [2, 32], strides = [1, 1]} : vector<2x128xf32> to vector<2x32xf32>
    %110 = arith.negf %109 : vector<2x32xf32>
    %111 = math.exp %110 : vector<2x32xf32>
    %cst_33 = arith.constant 1.000000e+00 : f32
    %112 = vector.broadcast %cst_33 : f32 to vector<2x32xf32>
    %113 = arith.addf %112, %111 : vector<2x32xf32>
    %114 = arith.divf %112, %113 : vector<2x32xf32>
    %115 = vector.extract_strided_slice %108 {offsets = [0, 32], sizes = [2, 32], strides = [1, 1]} : vector<2x128xf32> to vector<2x32xf32>
    %116 = arith.negf %115 : vector<2x32xf32>
    %117 = math.exp %116 : vector<2x32xf32>
    %cst_34 = arith.constant 1.000000e+00 : f32
    %118 = vector.broadcast %cst_34 : f32 to vector<2x32xf32>
    %119 = arith.addf %118, %117 : vector<2x32xf32>
    %120 = arith.divf %118, %119 : vector<2x32xf32>
    %121 = vector.extract_strided_slice %108 {offsets = [0, 64], sizes = [2, 32], strides = [1, 1]} : vector<2x128xf32> to vector<2x32xf32>
    %122 = math.tanh %121 : vector<2x32xf32>
    %123 = vector.extract_strided_slice %108 {offsets = [0, 96], sizes = [2, 32], strides = [1, 1]} : vector<2x128xf32> to vector<2x32xf32>
    %124 = arith.negf %123 : vector<2x32xf32>
    %125 = math.exp %124 : vector<2x32xf32>
    %cst_35 = arith.constant 1.000000e+00 : f32
    %126 = vector.broadcast %cst_35 : f32 to vector<2x32xf32>
    %127 = arith.addf %126, %125 : vector<2x32xf32>
    %128 = arith.divf %126, %127 : vector<2x32xf32>
    %129 = arith.mulf %120, %101 : vector<2x32xf32>
    %130 = arith.mulf %114, %122 : vector<2x32xf32>
    %131 = arith.addf %129, %130 : vector<2x32xf32>
    %132 = math.tanh %131 : vector<2x32xf32>
    %133 = arith.mulf %128, %132 : vector<2x32xf32>
    %c4_i32 = arith.constant 4 : i32
    %134 = arith.index_cast %c4_i32 : i32 to index
    %c0_36 = arith.constant 0 : index
    %c0_37 = arith.constant 0 : index
    %135 = vector.load %arg8[%134, %c0_36, %c0_37] : memref<8x2x128xf32, #tpu.memory_space<vmem>>, vector<1x2x128xf32>
    %136 = vector.shape_cast %135 : vector<1x2x128xf32> to vector<2x128xf32>
    %cst_38 = arith.constant dense<0.000000e+00> : vector<2x128xf32>
    %137 = tpu.matmul %133, %11, %cst_38 {dimension_numbers = #tpu.dot_dimension_numbers<[1], [0], [0], [1], [0, 0, 1, 1], [], []>} : vector<2x32xf32>, vector<32x128xf32>, vector<2x128xf32> -> vector<2x128xf32>
    %138 = arith.addf %136, %137 : vector<2x128xf32>
    %139 = vector.extract_strided_slice %138 {offsets = [0, 0], sizes = [2, 32], strides = [1, 1]} : vector<2x128xf32> to vector<2x32xf32>
    %140 = arith.negf %139 : vector<2x32xf32>
    %141 = math.exp %140 : vector<2x32xf32>
    %cst_39 = arith.constant 1.000000e+00 : f32
    %142 = vector.broadcast %cst_39 : f32 to vector<2x32xf32>
    %143 = arith.addf %142, %141 : vector<2x32xf32>
    %144 = arith.divf %142, %143 : vector<2x32xf32>
    %145 = vector.extract_strided_slice %138 {offsets = [0, 32], sizes = [2, 32], strides = [1, 1]} : vector<2x128xf32> to vector<2x32xf32>
    %146 = arith.negf %145 : vector<2x32xf32>
    %147 = math.exp %146 : vector<2x32xf32>
    %cst_40 = arith.constant 1.000000e+00 : f32
    %148 = vector.broadcast %cst_40 : f32 to vector<2x32xf32>
    %149 = arith.addf %148, %147 : vector<2x32xf32>
    %150 = arith.divf %148, %149 : vector<2x32xf32>
    %151 = vector.extract_strided_slice %138 {offsets = [0, 64], sizes = [2, 32], strides = [1, 1]} : vector<2x128xf32> to vector<2x32xf32>
    %152 = math.tanh %151 : vector<2x32xf32>
    %153 = vector.extract_strided_slice %138 {offsets = [0, 96], sizes = [2, 32], strides = [1, 1]} : vector<2x128xf32> to vector<2x32xf32>
    %154 = arith.negf %153 : vector<2x32xf32>
    %155 = math.exp %154 : vector<2x32xf32>
    %cst_41 = arith.constant 1.000000e+00 : f32
    %156 = vector.broadcast %cst_41 : f32 to vector<2x32xf32>
    %157 = arith.addf %156, %155 : vector<2x32xf32>
    %158 = arith.divf %156, %157 : vector<2x32xf32>
    %159 = arith.mulf %150, %131 : vector<2x32xf32>
    %160 = arith.mulf %144, %152 : vector<2x32xf32>
    %161 = arith.addf %159, %160 : vector<2x32xf32>
    %162 = math.tanh %161 : vector<2x32xf32>
    %163 = arith.mulf %158, %162 : vector<2x32xf32>
    %c5_i32 = arith.constant 5 : i32
    %164 = arith.index_cast %c5_i32 : i32 to index
    %c0_42 = arith.constant 0 : index
    %c0_43 = arith.constant 0 : index
    %165 = vector.load %arg8[%164, %c0_42, %c0_43] : memref<8x2x128xf32, #tpu.memory_space<vmem>>, vector<1x2x128xf32>
    %166 = vector.shape_cast %165 : vector<1x2x128xf32> to vector<2x128xf32>
    %cst_44 = arith.constant dense<0.000000e+00> : vector<2x128xf32>
    %167 = tpu.matmul %163, %11, %cst_44 {dimension_numbers = #tpu.dot_dimension_numbers<[1], [0], [0], [1], [0, 0, 1, 1], [], []>} : vector<2x32xf32>, vector<32x128xf32>, vector<2x128xf32> -> vector<2x128xf32>
    %168 = arith.addf %166, %167 : vector<2x128xf32>
    %169 = vector.extract_strided_slice %168 {offsets = [0, 0], sizes = [2, 32], strides = [1, 1]} : vector<2x128xf32> to vector<2x32xf32>
    %170 = arith.negf %169 : vector<2x32xf32>
    %171 = math.exp %170 : vector<2x32xf32>
    %cst_45 = arith.constant 1.000000e+00 : f32
    %172 = vector.broadcast %cst_45 : f32 to vector<2x32xf32>
    %173 = arith.addf %172, %171 : vector<2x32xf32>
    %174 = arith.divf %172, %173 : vector<2x32xf32>
    %175 = vector.extract_strided_slice %168 {offsets = [0, 32], sizes = [2, 32], strides = [1, 1]} : vector<2x128xf32> to vector<2x32xf32>
    %176 = arith.negf %175 : vector<2x32xf32>
    %177 = math.exp %176 : vector<2x32xf32>
    %cst_46 = arith.constant 1.000000e+00 : f32
    %178 = vector.broadcast %cst_46 : f32 to vector<2x32xf32>
    %179 = arith.addf %178, %177 : vector<2x32xf32>
    %180 = arith.divf %178, %179 : vector<2x32xf32>
    %181 = vector.extract_strided_slice %168 {offsets = [0, 64], sizes = [2, 32], strides = [1, 1]} : vector<2x128xf32> to vector<2x32xf32>
    %182 = math.tanh %181 : vector<2x32xf32>
    %183 = vector.extract_strided_slice %168 {offsets = [0, 96], sizes = [2, 32], strides = [1, 1]} : vector<2x128xf32> to vector<2x32xf32>
    %184 = arith.negf %183 : vector<2x32xf32>
    %185 = math.exp %184 : vector<2x32xf32>
    %cst_47 = arith.constant 1.000000e+00 : f32
    %186 = vector.broadcast %cst_47 : f32 to vector<2x32xf32>
    %187 = arith.addf %186, %185 : vector<2x32xf32>
    %188 = arith.divf %186, %187 : vector<2x32xf32>
    %189 = arith.mulf %180, %161 : vector<2x32xf32>
    %190 = arith.mulf %174, %182 : vector<2x32xf32>
    %191 = arith.addf %189, %190 : vector<2x32xf32>
    %192 = math.tanh %191 : vector<2x32xf32>
    %193 = arith.mulf %188, %192 : vector<2x32xf32>
    %c6_i32 = arith.constant 6 : i32
    %194 = arith.index_cast %c6_i32 : i32 to index
    %c0_48 = arith.constant 0 : index
    %c0_49 = arith.constant 0 : index
    %195 = vector.load %arg8[%194, %c0_48, %c0_49] : memref<8x2x128xf32, #tpu.memory_space<vmem>>, vector<1x2x128xf32>
    %196 = vector.shape_cast %195 : vector<1x2x128xf32> to vector<2x128xf32>
    %cst_50 = arith.constant dense<0.000000e+00> : vector<2x128xf32>
    %197 = tpu.matmul %193, %11, %cst_50 {dimension_numbers = #tpu.dot_dimension_numbers<[1], [0], [0], [1], [0, 0, 1, 1], [], []>} : vector<2x32xf32>, vector<32x128xf32>, vector<2x128xf32> -> vector<2x128xf32>
    %198 = arith.addf %196, %197 : vector<2x128xf32>
    %199 = vector.extract_strided_slice %198 {offsets = [0, 0], sizes = [2, 32], strides = [1, 1]} : vector<2x128xf32> to vector<2x32xf32>
    %200 = arith.negf %199 : vector<2x32xf32>
    %201 = math.exp %200 : vector<2x32xf32>
    %cst_51 = arith.constant 1.000000e+00 : f32
    %202 = vector.broadcast %cst_51 : f32 to vector<2x32xf32>
    %203 = arith.addf %202, %201 : vector<2x32xf32>
    %204 = arith.divf %202, %203 : vector<2x32xf32>
    %205 = vector.extract_strided_slice %198 {offsets = [0, 32], sizes = [2, 32], strides = [1, 1]} : vector<2x128xf32> to vector<2x32xf32>
    %206 = arith.negf %205 : vector<2x32xf32>
    %207 = math.exp %206 : vector<2x32xf32>
    %cst_52 = arith.constant 1.000000e+00 : f32
    %208 = vector.broadcast %cst_52 : f32 to vector<2x32xf32>
    %209 = arith.addf %208, %207 : vector<2x32xf32>
    %210 = arith.divf %208, %209 : vector<2x32xf32>
    %211 = vector.extract_strided_slice %198 {offsets = [0, 64], sizes = [2, 32], strides = [1, 1]} : vector<2x128xf32> to vector<2x32xf32>
    %212 = math.tanh %211 : vector<2x32xf32>
    %213 = vector.extract_strided_slice %198 {offsets = [0, 96], sizes = [2, 32], strides = [1, 1]} : vector<2x128xf32> to vector<2x32xf32>
    %214 = arith.negf %213 : vector<2x32xf32>
    %215 = math.exp %214 : vector<2x32xf32>
    %cst_53 = arith.constant 1.000000e+00 : f32
    %216 = vector.broadcast %cst_53 : f32 to vector<2x32xf32>
    %217 = arith.addf %216, %215 : vector<2x32xf32>
    %218 = arith.divf %216, %217 : vector<2x32xf32>
    %219 = arith.mulf %210, %191 : vector<2x32xf32>
    %220 = arith.mulf %204, %212 : vector<2x32xf32>
    %221 = arith.addf %219, %220 : vector<2x32xf32>
    %222 = math.tanh %221 : vector<2x32xf32>
    %223 = arith.mulf %218, %222 : vector<2x32xf32>
    %c7_i32 = arith.constant 7 : i32
    %224 = arith.index_cast %c7_i32 : i32 to index
    %c0_54 = arith.constant 0 : index
    %c0_55 = arith.constant 0 : index
    %225 = vector.load %arg8[%224, %c0_54, %c0_55] : memref<8x2x128xf32, #tpu.memory_space<vmem>>, vector<1x2x128xf32>
    %226 = vector.shape_cast %225 : vector<1x2x128xf32> to vector<2x128xf32>
    %cst_56 = arith.constant dense<0.000000e+00> : vector<2x128xf32>
    %227 = tpu.matmul %223, %11, %cst_56 {dimension_numbers = #tpu.dot_dimension_numbers<[1], [0], [0], [1], [0, 0, 1, 1], [], []>} : vector<2x32xf32>, vector<32x128xf32>, vector<2x128xf32> -> vector<2x128xf32>
    %228 = arith.addf %226, %227 : vector<2x128xf32>
    %229 = vector.extract_strided_slice %228 {offsets = [0, 0], sizes = [2, 32], strides = [1, 1]} : vector<2x128xf32> to vector<2x32xf32>
    %230 = arith.negf %229 : vector<2x32xf32>
    %231 = math.exp %230 : vector<2x32xf32>
    %cst_57 = arith.constant 1.000000e+00 : f32
    %232 = vector.broadcast %cst_57 : f32 to vector<2x32xf32>
    %233 = arith.addf %232, %231 : vector<2x32xf32>
    %234 = arith.divf %232, %233 : vector<2x32xf32>
    %235 = vector.extract_strided_slice %228 {offsets = [0, 32], sizes = [2, 32], strides = [1, 1]} : vector<2x128xf32> to vector<2x32xf32>
    %236 = arith.negf %235 : vector<2x32xf32>
    %237 = math.exp %236 : vector<2x32xf32>
    %cst_58 = arith.constant 1.000000e+00 : f32
    %238 = vector.broadcast %cst_58 : f32 to vector<2x32xf32>
    %239 = arith.addf %238, %237 : vector<2x32xf32>
    %240 = arith.divf %238, %239 : vector<2x32xf32>
    %241 = vector.extract_strided_slice %228 {offsets = [0, 64], sizes = [2, 32], strides = [1, 1]} : vector<2x128xf32> to vector<2x32xf32>
    %242 = math.tanh %241 : vector<2x32xf32>
    %243 = vector.extract_strided_slice %228 {offsets = [0, 96], sizes = [2, 32], strides = [1, 1]} : vector<2x128xf32> to vector<2x32xf32>
    %244 = arith.negf %243 : vector<2x32xf32>
    %245 = math.exp %244 : vector<2x32xf32>
    %cst_59 = arith.constant 1.000000e+00 : f32
    %246 = vector.broadcast %cst_59 : f32 to vector<2x32xf32>
    %247 = arith.addf %246, %245 : vector<2x32xf32>
    %248 = arith.divf %246, %247 : vector<2x32xf32>
    %249 = arith.mulf %240, %221 : vector<2x32xf32>
    %250 = arith.mulf %234, %242 : vector<2x32xf32>
    %251 = arith.addf %249, %250 : vector<2x32xf32>
    %252 = math.tanh %251 : vector<2x32xf32>
    %253 = arith.mulf %248, %252 : vector<2x32xf32>
    %c8_i32 = arith.constant 8 : i32
    %c0_60 = arith.constant 0 : index
    %c0_61 = arith.constant 0 : index
    %254 = vector.load %arg5[%c0_60, %c0_61] : memref<32x128xf32, #tpu.memory_space<vmem>>, vector<32x128xf32>
    %cst_62 = arith.constant dense<0.000000e+00> : vector<2x128xf32>
    %255 = tpu.matmul %253, %254, %cst_62 {dimension_numbers = #tpu.dot_dimension_numbers<[1], [0], [0], [1], [0, 0, 1, 1], [], []>} : vector<2x32xf32>, vector<32x128xf32>, vector<2x128xf32> -> vector<2x128xf32>
    %c0_63 = arith.constant 0 : index
    %c0_64 = arith.constant 0 : index
    %256 = vector.load %arg6[%c0_63, %c0_64] : memref<1x128xf32, #tpu.memory_space<vmem>>, vector<1x128xf32>
    %257 = vector.broadcast %256 : vector<1x128xf32> to vector<2x128xf32>
    %258 = arith.addf %255, %257 : vector<2x128xf32>
    %c0_65 = arith.constant 0 : index
    %c0_66 = arith.constant 0 : index
    %259 = vector.load %arg7[%c0_65, %c0_66] : memref<2x128xf32, #tpu.memory_space<vmem>>, vector<2x128xf32>
    tpu.vector_store %arg7[%c0_65, %c0_66], %258 {strides = array<i32>} : memref<2x128xf32, #tpu.memory_space<vmem>>, vector<2x128xf32>,
    return
  }
  func.func @transform_0(%arg0: i32) -> (i32, i32, i32) {
    %c0_i32 = arith.constant 0 : i32
    %c0_i32_0 = arith.constant 0 : i32
    %c0_i32_1 = arith.constant 0 : i32
    %c0_i32_2 = arith.constant 0 : i32
    return %c0_i32, %c0_i32_0, %c0_i32_1 : i32, i32, i32
  }
  func.func @transform_1(%arg0: i32) -> (i32, i32) {
    %c0_i32 = arith.constant 0 : i32
    %c0_i32_0 = arith.constant 0 : i32
    %c0_i32_1 = arith.constant 0 : i32
    return %c0_i32, %c0_i32_0 : i32, i32
  }
  func.func @transform_2(%arg0: i32) -> (i32, i32) {
    %c0_i32 = arith.constant 0 : i32
    %c0_i32_0 = arith.constant 0 : i32
    %c0_i32_1 = arith.constant 0 : i32
    return %c0_i32, %c0_i32_0 : i32, i32
  }
  func.func @transform_3(%arg0: i32) -> (i32, i32) {
    %c0_i32 = arith.constant 0 : i32
    %c0_i32_0 = arith.constant 0 : i32
    %c0_i32_1 = arith.constant 0 : i32
    return %c0_i32, %c0_i32_0 : i32, i32
  }
  func.func @transform_4(%arg0: i32) -> (i32, i32) {
    %c0_i32 = arith.constant 0 : i32
    %c0_i32_0 = arith.constant 0 : i32
    %c0_i32_1 = arith.constant 0 : i32
    return %c0_i32, %c0_i32_0 : i32, i32
  }
  func.func @transform_5(%arg0: i32) -> (i32, i32) {
    %c0_i32 = arith.constant 0 : i32
    %c0_i32_0 = arith.constant 0 : i32
    %c0_i32_1 = arith.constant 0 : i32
    return %c0_i32, %c0_i32_0 : i32, i32
  }
  func.func @transform_6(%arg0: i32) -> (i32, i32) {
    %c0_i32 = arith.constant 0 : i32
    %c0_i32_0 = arith.constant 0 : i32
    %c0_i32_1 = arith.constant 0 : i32
    return %c0_i32, %c0_i32_0 : i32, i32
  }
}

</mosaic_0001>

<llo_original>
// kernel: lstm_model_forward.1
$region0: #{lstm_model_forward.1}
  #allocation0 [shape = 'u32[]', space=smem, size = 0x4, offset = 0x4, fixed_abs, tag = 'smem constant byte address 0x4 - core index']
  #allocation1 [shape = 'u32[144,128]{1,0:T(1,128)}', space=vmem, size = 0x12000, scoped, tag = 'internal scratch']
  #allocation2 [shape = 'f32[8,2,128]{2,1,0:T(2,128)}', space=vmem, size = 0x2000, scoped, tag = 'scratch operand']
  %s0 = inlined_call_operand.vmem [shape: f32[8,2,1], index: 0, kind: input, shape index: {}]
  %s1 = inlined_call_operand.vmem [shape: f32[1,128], index: 1, kind: input, shape index: {}]
  %s2 = inlined_call_operand.hbm [shape: f32[32,128], index: 2, kind: input, shape index: {}]
  %s3 = inlined_call_operand.vmem [shape: f32[1,128], index: 3, kind: input, shape index: {}]
  %s4 = inlined_call_operand.hbm [shape: f32[32,128], index: 4, kind: input, shape index: {}]
  %s5 = inlined_call_operand.vmem [shape: f32[1,128], index: 5, kind: input, shape index: {}]
  %s6 = inlined_call_operand.vmem [shape: f32[2,128], index: 6, kind: output, shape index: {}]
  %s7 = sld [smem:[#allocation0]]
  $region42: #{lstm_model_forward.1} parent=0
    _
  %s9 = ssub.s32 1, %s7
  %s10 = scalar_select 0, %s9, %s7
  $region1: #{lstm_model_forward.1} parent=0
    #allocation3 [shape = 'u8[16384]{0}', space=vmem, size = 0x4000, scoped, tag = 'input window, operand 2, single buffered']
    #allocation4 [shape = 's32[1]{0}', space=sflag, size = 0x4, scoped, tag = 'scoped memory for lstm_model_forward.1']
    #allocation5 [shape = 'u8[16384]{0}', space=vmem, size = 0x4000, scoped, tag = 'input window, operand 4, single buffered']
    #allocation6 [shape = 's32[1]{0}', space=sflag, size = 0x4, scoped, tag = 'scoped memory for lstm_model_forward.1']
    %11 = vsyncpa [#allocation4], 0
    %12 = vsyncpa [#allocation6], 0
    // Predicated region
    $region2: #{lstm_model_forward.1} parent=1 // pred_check
      _
    $region3: #{lstm_model_forward.1} parent=1 // pred_check_branch
      %14 = sbr.rel (0) target = $region5
    $region4: #{lstm_model_forward.1} parent=1 // pred_region
      _
    $region5: #{lstm_model_forward.1} parent=1 // pred_fallthru
      _
    // Predicated region
    $region6: #{lstm_model_forward.1} parent=1 // pred_check
      _
    $region7: #{lstm_model_forward.1} parent=1 // pred_check_branch
      %16 = sbr.rel (0) target = $region9
    $region8: #{lstm_model_forward.1} parent=1 // pred_region
      _
    $region9: #{lstm_model_forward.1} parent=1 // pred_fallthru
      _
    // Predicated region
    $region10: #{lstm_model_forward.1} parent=1 // pred_check
      _
    $region11: #{lstm_model_forward.1} parent=1 // pred_check_branch
      %18 = sbr.rel (0) target = $region13
    $region12: #{lstm_model_forward.1} parent=1 // pred_region
      %s20 = ssub.s32 512, 512
      %21 = vsyncadd [#allocation4], %s20
      %s22 = sshll.u32 [#allocation3], 4
      %s23 = int_to_ptr.vmem [resolvable:$true] %s22
      %28 = dma.hbm_to_vmem [thread:$0]  %s2, 512, %s23, [#allocation4], 128, 128, 8
    $region13: #{lstm_model_forward.1} parent=1 // pred_fallthru
      _
    // Predicated region
    $region14: #{lstm_model_forward.1} parent=1 // pred_check
      _
    $region15: #{lstm_model_forward.1} parent=1 // pred_check_branch
      %30 = sbr.rel (0) target = $region17
    $region16: #{lstm_model_forward.1} parent=1 // pred_region
      _
    $region17: #{lstm_model_forward.1} parent=1 // pred_fallthru
      _
    // Predicated region
    $region18: #{lstm_model_forward.1} parent=1 // pred_check
      _
    $region19: #{lstm_model_forward.1} parent=1 // pred_check_branch
      %32 = sbr.rel (0) target = $region21
    $region20: #{lstm_model_forward.1} parent=1 // pred_region
      %s34 = ssub.s32 512, 512
      %35 = vsyncadd [#allocation6], %s34
      %s36 = sshll.u32 [#allocation5], 4
      %s37 = int_to_ptr.vmem [resolvable:$true] %s36
      %42 = dma.hbm_to_vmem [thread:$0]  %s4, 512, %s37, [#allocation6], 128, 128, 8
    $region21: #{lstm_model_forward.1} parent=1 // pred_fallthru
      _
    // Predicated region
    $region22: #{lstm_model_forward.1} parent=1 // pred_check
      _
    $region23: #{lstm_model_forward.1} parent=1 // pred_check_branch
      %44 = sbr.rel (0) target = $region25
    $region24: #{lstm_model_forward.1} parent=1 // pred_region
      _
    $region25: #{lstm_model_forward.1} parent=1 // pred_fallthru
      _
    // Predicated region
    $region26: #{lstm_model_forward.1} parent=1 // pred_check
      _
    $region27: #{lstm_model_forward.1} parent=1 // pred_check_branch
      %46 = sbr.rel (0) target = $region29
    $region28: #{lstm_model_forward.1} parent=1 // pred_region
      %47 = dma.done [#allocation4], 512
    $region29: #{lstm_model_forward.1} parent=1 // pred_fallthru
      _
    // Predicated region
    $region30: #{lstm_model_forward.1} parent=1 // pred_check
      _
    $region31: #{lstm_model_forward.1} parent=1 // pred_check_branch
      %49 = sbr.rel (0) target = $region33
    $region32: #{lstm_model_forward.1} parent=1 // pred_region
      %50 = dma.done [#allocation6], 512
    $region33: #{lstm_model_forward.1} parent=1 // pred_fallthru
      _
    %v51 = vld [vmem:[%s0] sm:$0x3]
    %v52 = vld [vmem:[%s0 + $0x2] sm:$0x3]
    %v53 = vld [vmem:[%s0 + $0x4] sm:$0x3]
    %v54 = vld [vmem:[%s0 + $0x6] sm:$0x3]
    %v55 = vld [vmem:[%s0 + $0x8] sm:$0x3]
    %v56 = vld [vmem:[%s0 + $0xa] sm:$0x3]
    %v57 = vld [vmem:[%s0 + $0xc] sm:$0x3]
    %v58 = vld [vmem:[%s0 + $0xe] sm:$0x3]
    %v59 = vld [vmem:[%s1] sm:$0x1]
    %61 = vset.pattern.permute.xlu0 0
    %62 = vperm.xlu0 %61, %v51
    %v63 = vpop.permute.xlu0 %62
    %66 = vset.pattern.permute.xlu0 0
    %67 = vperm.xlu0 %66, %v52
    %v68 = vpop.permute.xlu0 %67
    %71 = vset.pattern.permute.xlu0 0
    %72 = vperm.xlu0 %71, %v53
    %v73 = vpop.permute.xlu0 %72
    %76 = vset.pattern.permute.xlu0 0
    %77 = vperm.xlu0 %76, %v54
    %v78 = vpop.permute.xlu0 %77
    %81 = vset.pattern.permute.xlu0 0
    %82 = vperm.xlu0 %81, %v55
    %v83 = vpop.permute.xlu0 %82
    %86 = vset.pattern.permute.xlu0 0
    %87 = vperm.xlu0 %86, %v56
    %v88 = vpop.permute.xlu0 %87
    %91 = vset.pattern.permute.xlu0 0
    %92 = vperm.xlu0 %91, %v57
    %v93 = vpop.permute.xlu0 %92
    %96 = vset.pattern.permute.xlu0 0
    %97 = vperm.xlu0 %96, %v58
    %v98 = vpop.permute.xlu0 %97
    %v101 = vlaneseq
    %v102 = vshrl.u32 %v101, 7
    %v103 = vsub.s32 0, %v102
    %v104 = vrot.slane %v59, %v103
    %v106 = vmul.f32 %v63, %v104
    %v107 = vmul.f32 %v68, %v104
    %v108 = vmul.f32 %v73, %v104
    %v109 = vmul.f32 %v78, %v104
    %v110 = vmul.f32 %v83, %v104
    %v111 = vmul.f32 %v88, %v104
    %v112 = vmul.f32 %v93, %v104
    %v113 = vmul.f32 %v98, %v104
    %v114 = vld [vmem:[%s3] sm:$0x1]
    %v116 = vlaneseq
    %v117 = vshrl.u32 %v116, 7
    %v118 = vsub.s32 0, %v117
    %v119 = vrot.slane %v114, %v118
    %v121 = vadd.f32 %v106, %v119
    %v122 = vadd.f32 %v107, %v119
    %v123 = vadd.f32 %v108, %v119
    %v124 = vadd.f32 %v109, %v119
    %v125 = vadd.f32 %v110, %v119
    %v126 = vadd.f32 %v111, %v119
    %v127 = vadd.f32 %v112, %v119
    %v128 = vadd.f32 %v113, %v119
    %129 = vst [vmem:[#allocation2] sm:$0x3] %v121
    %130 = vst [vmem:[#allocation2 + $0x2] sm:$0x3] %v122
    %131 = vst [vmem:[#allocation2 + $0x4] sm:$0x3] %v123
    %132 = vst [vmem:[#allocation2 + $0x6] sm:$0x3] %v124
    %133 = vst [vmem:[#allocation2 + $0x8] sm:$0x3] %v125
    %134 = vst [vmem:[#allocation2 + $0xa] sm:$0x3] %v126
    %135 = vst [vmem:[#allocation2 + $0xc] sm:$0x3] %v127
    %136 = vst [vmem:[#allocation2 + $0xe] sm:$0x3] %v128
    %v137 = vld [vmem:[#allocation3] sm:$0xff]
    %v138 = vld [vmem:[#allocation3 + $0x8] sm:$0xff]
    %v139 = vld [vmem:[#allocation3 + $0x10] sm:$0xff]
    %v140 = vld [vmem:[#allocation3 + $0x18] sm:$0xff]
    %v141 = vld [vmem:[#allocation2] sm:$0x3]
    %vm142 = vcmask 261120
    %v144 = vsel %vm142, 0.0, 0
    %146 = vmatprep.subr.mxu0 0.0
    %147 = vmatpush1.msra.mxu0 0.0
    %148 = vmatprep.subr.mxu0 0.0
    %149 = vmatpush1.msra.mxu0 0.0
    %150 = vmatprep.subr.mxu0 0.0
    %151 = vmatpush1.msra.mxu0 0.0
    %152 = vmatprep.subr.mxu0 0.0
    %153 = vmatpush1.msra.mxu0 0.0
    %154 = vmatprep.subr.mxu0 0.0
    %155 = vmatpush1.msra.mxu0 0.0
    %156 = vmatprep.subr.mxu0 0.0
    %157 = vmatpush1.msra.mxu0 0.0
    %158 = vmatprep.subr.mxu0 0.0
    %159 = vmatpush1.msra.mxu0 0.0
    %160 = vmatprep.subr.mxu0 0.0
    %161 = vmatpush1.msra.mxu0 0.0
    %162 = vmatprep.subr.mxu0 0.0
    %163 = vmatpush1.msra.mxu0 0.0
    %164 = vmatprep.subr.mxu0 0.0
    %165 = vmatpush1.msra.mxu0 0.0
    %166 = vmatprep.subr.mxu0 0.0
    %167 = vmatpush1.msra.mxu0 0.0
    %168 = vmatprep.subr.mxu0 0.0
    %169 = vmatpush1.msra.mxu0 0.0
    %170 = vmatprep.subr.mxu0 0.0
    %171 = vmatpush1.msra.mxu0 %v140
    %172 = vmatprep.subr.mxu0 0.0
    %173 = vmatpush1.msra.mxu0 %v139
    %174 = vmatprep.subr.mxu0 0.0
    %175 = vmatpush1.msra.mxu0 %v138
    %176 = vmatprep.subr.mxu0 0.0
    %177 = vmatpush1.msra.mxu0 %v137
    %178 = vmatprep.subr.mxu0 0.0
    %179 = vmatpush2.msra.mxu0 0.0
    %180 = vmatprep.subr.mxu0 0.0
    %181 = vmatpush2.msra.mxu0 0.0
    %182 = vmatprep.subr.mxu0 0.0
    %183 = vmatpush2.msra.mxu0 0.0
    %184 = vmatprep.subr.mxu0 0.0
    %185 = vmatpush2.msra.mxu0 0.0
    %186 = vmatprep.subr.mxu0 0.0
    %187 = vmatpush2.msra.mxu0 0.0
    %188 = vmatprep.subr.mxu0 0.0
    %189 = vmatpush2.msra.mxu0 0.0
    %190 = vmatprep.subr.mxu0 0.0
    %191 = vmatpush2.msra.mxu0 0.0
    %192 = vmatprep.subr.mxu0 0.0
    %193 = vmatpush2.msra.mxu0 0.0
    %194 = vmatprep.subr.mxu0 0.0
    %195 = vmatpush2.msra.mxu0 0.0
    %196 = vmatprep.subr.mxu0 0.0
    %197 = vmatpush2.msra.mxu0 0.0
    %198 = vmatprep.subr.mxu0 0.0
    %199 = vmatpush2.msra.mxu0 0.0
    %200 = vmatprep.subr.mxu0 0.0
    %201 = vmatpush2.msra.mxu0 0.0
    %202 = vmatprep.subr.mxu0 0.0
    %203 = vmatpush2.msra.mxu0 0.0
    %204 = vmatprep.subr.mxu0 0.0
    %205 = vmatpush2.msra.mxu0 0.0
    %206 = vmatprep.subr.mxu0 0.0
    %207 = vmatpush2.msra.mxu0 0.0
    %208 = vmatprep.subr.mxu0 0.0
    %209 = vmatpush2.msra.mxu0 0.0
    %210 = vmatprep.mubr.f32.mxu0 0.0
    %211 = vmatmul.mubr.f32.gmra.mxu0 %v144
    %v212 = vpop.f32.mrf.mxu0
    %v213 = vadd.f32 0.0, %v212
    %v214 = vpop.f32.mrf.mxu0
    %215 = vdwg.mxu0
    %v216 = vadd.f32 %v141, %v213
    %v217 = vxor.u32 %v216, 2147483648
    %v218 = vmul.f32 %v217, 1.442695
    %v219 = vpow.pop %v218
    %v220 = vadd.f32 %v219, 1.0
    %v221 = vrcp.pop %v220
    %v222 = vmul.f32 1.0, %v221
    %v223 = vtanh.pop %v216
    %v224 = vmul.f32 %v222, 0.0
    %226 = vrot.lane.b32.xlu0 %v223, 64
    %v227 = vpop.permute.xlu0 %226
    %v229 = vmul.f32 %v222, %v227
    %231 = vrot.lane.b32.xlu0 %v229, 32
    %v232 = vpop.permute.xlu0 %231
    %v234 = vadd.f32 %v224, %v232
    %v235 = vtanh.pop %v234
    %237 = vrot.lane.b32.xlu0 %v235, 64
    %v238 = vpop.permute.xlu0 %237
    %v240 = vmul.f32 %v222, %v238
    %s241 = scalar_lea.vmem [#allocation2], 2
    %v242 = vld [vmem:[%s241] sm:$0x3]
    %244 = vrot.lane.b32.xlu0 %v240, 32
    %v245 = vpop.permute.xlu0 %244
    %v246 = vsel %vm142, %v245, 0
    %248 = vmatprep.subr.mxu0 0.0
    %249 = vmatpush1.msra.mxu0 0.0
    %250 = vmatprep.subr.mxu0 0.0
    %251 = vmatpush1.msra.mxu0 0.0
    %252 = vmatprep.subr.mxu0 0.0
    %253 = vmatpush1.msra.mxu0 0.0
    %254 = vmatprep.subr.mxu0 0.0
    %255 = vmatpush1.msra.mxu0 0.0
    %256 = vmatprep.subr.mxu0 0.0
    %257 = vmatpush1.msra.mxu0 0.0
    %258 = vmatprep.subr.mxu0 0.0
    %259 = vmatpush1.msra.mxu0 0.0
    %260 = vmatprep.subr.mxu0 0.0
    %261 = vmatpush1.msra.mxu0 0.0
    %262 = vmatprep.subr.mxu0 0.0
    %263 = vmatpush1.msra.mxu0 0.0
    %264 = vmatprep.subr.mxu0 0.0
    %265 = vmatpush1.msra.mxu0 0.0
    %266 = vmatprep.subr.mxu0 0.0
    %267 = vmatpush1.msra.mxu0 0.0
    %268 = vmatprep.subr.mxu0 0.0
    %269 = vmatpush1.msra.mxu0 0.0
    %270 = vmatprep.subr.mxu0 0.0
    %271 = vmatpush1.msra.mxu0 0.0
    %272 = vmatprep.subr.mxu0 0.0
    %273 = vmatpush1.msra.mxu0 %v140
    %274 = vmatprep.subr.mxu0 0.0
    %275 = vmatpush1.msra.mxu0 %v139
    %276 = vmatprep.subr.mxu0 0.0
    %277 = vmatpush1.msra.mxu0 %v138
    %278 = vmatprep.subr.mxu0 0.0
    %279 = vmatpush1.msra.mxu0 %v137
    %280 = vmatprep.subr.mxu0 0.0
    %281 = vmatpush2.msra.mxu0 0.0
    %282 = vmatprep.subr.mxu0 0.0
    %283 = vmatpush2.msra.mxu0 0.0
    %284 = vmatprep.subr.mxu0 0.0
    %285 = vmatpush2.msra.mxu0 0.0
    %286 = vmatprep.subr.mxu0 0.0
    %287 = vmatpush2.msra.mxu0 0.0
    %288 = vmatprep.subr.mxu0 0.0
    %289 = vmatpush2.msra.mxu0 0.0
    %290 = vmatprep.subr.mxu0 0.0
    %291 = vmatpush2.msra.mxu0 0.0
    %292 = vmatprep.subr.mxu0 0.0
    %293 = vmatpush2.msra.mxu0 0.0
    %294 = vmatprep.subr.mxu0 0.0
    %295 = vmatpush2.msra.mxu0 0.0
    %296 = vmatprep.subr.mxu0 0.0
    %297 = vmatpush2.msra.mxu0 0.0
    %298 = vmatprep.subr.mxu0 0.0
    %299 = vmatpush2.msra.mxu0 0.0
    %300 = vmatprep.subr.mxu0 0.0
    %301 = vmatpush2.msra.mxu0 0.0
    %302 = vmatprep.subr.mxu0 0.0
    %303 = vmatpush2.msra.mxu0 0.0
    %304 = vmatprep.subr.mxu0 0.0
    %305 = vmatpush2.msra.mxu0 0.0
    %306 = vmatprep.subr.mxu0 0.0
    %307 = vmatpush2.msra.mxu0 0.0
    %308 = vmatprep.subr.mxu0 0.0
    %309 = vmatpush2.msra.mxu0 0.0
    %310 = vmatprep.subr.mxu0 0.0
    %311 = vmatpush2.msra.mxu0 0.0
    %312 = vmatprep.mubr.f32.mxu0 0.0
    %313 = vmatmul.mubr.f32.gmra.mxu0 %v246
    %v314 = vpop.f32.mrf.mxu0
    %v315 = vadd.f32 0.0, %v314
    %v316 = vpop.f32.mrf.mxu0
    %317 = vdwg.mxu0
    %v318 = vadd.f32 %v242, %v315
    %v319 = vxor.u32 %v318, 2147483648
    %v320 = vmul.f32 %v319, 1.442695
    %v321 = vpow.pop %v320
    %v322 = vadd.f32 %v321, 1.0
    %v323 = vrcp.pop %v322
    %v324 = vmul.f32 1.0, %v323
    %v325 = vtanh.pop %v318
    %v326 = vmul.f32 %v324, %v234
    %328 = vrot.lane.b32.xlu0 %v325, 64
    %v329 = vpop.permute.xlu0 %328
    %v331 = vmul.f32 %v324, %v329
    %333 = vrot.lane.b32.xlu0 %v331, 32
    %v334 = vpop.permute.xlu0 %333
    %v336 = vadd.f32 %v326, %v334
    %v337 = vtanh.pop %v336
    %339 = vrot.lane.b32.xlu0 %v337, 64
    %v340 = vpop.permute.xlu0 %339
    %v342 = vmul.f32 %v324, %v340
    %s343 = scalar_lea.vmem [#allocation2], 4
    %v344 = vld [vmem:[%s343] sm:$0x3]
    %346 = vrot.lane.b32.xlu0 %v342, 32
    %v347 = vpop.permute.xlu0 %346
    %v348 = vsel %vm142, %v347, 0
    %350 = vmatprep.subr.mxu0 0.0
    %351 = vmatpush1.msra.mxu0 0.0
    %352 = vmatprep.subr.mxu0 0.0
    %353 = vmatpush1.msra.mxu0 0.0
    %354 = vmatprep.subr.mxu0 0.0
    %355 = vmatpush1.msra.mxu0 0.0
    %356 = vmatprep.subr.mxu0 0.0
    %357 = vmatpush1.msra.mxu0 0.0
    %358 = vmatprep.subr.mxu0 0.0
    %359 = vmatpush1.msra.mxu0 0.0
    %360 = vmatprep.subr.mxu0 0.0
    %361 = vmatpush1.msra.mxu0 0.0
    %362 = vmatprep.subr.mxu0 0.0
    %363 = vmatpush1.msra.mxu0 0.0
    %364 = vmatprep.subr.mxu0 0.0
    %365 = vmatpush1.msra.mxu0 0.0
    %366 = vmatprep.subr.mxu0 0.0
    %367 = vmatpush1.msra.mxu0 0.0
    %368 = vmatprep.subr.mxu0 0.0
    %369 = vmatpush1.msra.mxu0 0.0
    %370 = vmatprep.subr.mxu0 0.0
    %371 = vmatpush1.msra.mxu0 0.0
    %372 = vmatprep.subr.mxu0 0.0
    %373 = vmatpush1.msra.mxu0 0.0
    %374 = vmatprep.subr.mxu0 0.0
    %375 = vmatpush1.msra.mxu0 %v140
    %376 = vmatprep.subr.mxu0 0.0
    %377 = vmatpush1.msra.mxu0 %v139
    %378 = vmatprep.subr.mxu0 0.0
    %379 = vmatpush1.msra.mxu0 %v138
    %380 = vmatprep.subr.mxu0 0.0
    %381 = vmatpush1.msra.mxu0 %v137
    %382 = vmatprep.subr.mxu0 0.0
    %383 = vmatpush2.msra.mxu0 0.0
    %384 = vmatprep.subr.mxu0 0.0
    %385 = vmatpush2.msra.mxu0 0.0
    %386 = vmatprep.subr.mxu0 0.0
    %387 = vmatpush2.msra.mxu0 0.0
    %388 = vmatprep.subr.mxu0 0.0
    %389 = vmatpush2.msra.mxu0 0.0
    %390 = vmatprep.subr.mxu0 0.0
    %391 = vmatpush2.msra.mxu0 0.0
    %392 = vmatprep.subr.mxu0 0.0
    %393 = vmatpush2.msra.mxu0 0.0
    %394 = vmatprep.subr.mxu0 0.0
    %395 = vmatpush2.msra.mxu0 0.0
    %396 = vmatprep.subr.mxu0 0.0
    %397 = vmatpush2.msra.mxu0 0.0
    %398 = vmatprep.subr.mxu0 0.0
    %399 = vmatpush2.msra.mxu0 0.0
    %400 = vmatprep.subr.mxu0 0.0
    %401 = vmatpush2.msra.mxu0 0.0
    %402 = vmatprep.subr.mxu0 0.0
    %403 = vmatpush2.msra.mxu0 0.0
    %404 = vmatprep.subr.mxu0 0.0
    %405 = vmatpush2.msra.mxu0 0.0
    %406 = vmatprep.subr.mxu0 0.0
    %407 = vmatpush2.msra.mxu0 0.0
    %408 = vmatprep.subr.mxu0 0.0
    %409 = vmatpush2.msra.mxu0 0.0
    %410 = vmatprep.subr.mxu0 0.0
    %411 = vmatpush2.msra.mxu0 0.0
    %412 = vmatprep.subr.mxu0 0.0
    %413 = vmatpush2.msra.mxu0 0.0
    %414 = vmatprep.mubr.f32.mxu0 0.0
    %415 = vmatmul.mubr.f32.gmra.mxu0 %v348
    %v416 = vpop.f32.mrf.mxu0
    %v417 = vadd.f32 0.0, %v416
    %v418 = vpop.f32.mrf.mxu0
    %419 = vdwg.mxu0
    %v420 = vadd.f32 %v344, %v417
    %v421 = vxor.u32 %v420, 2147483648
    %v422 = vmul.f32 %v421, 1.442695
    %v423 = vpow.pop %v422
    %v424 = vadd.f32 %v423, 1.0
    %v425 = vrcp.pop %v424
    %v426 = vmul.f32 1.0, %v425
    %v427 = vtanh.pop %v420
    %v428 = vmul.f32 %v426, %v336
    %430 = vrot.lane.b32.xlu0 %v427, 64
    %v431 = vpop.permute.xlu0 %430
    %v433 = vmul.f32 %v426, %v431
    %435 = vrot.lane.b32.xlu0 %v433, 32
    %v436 = vpop.permute.xlu0 %435
    %v438 = vadd.f32 %v428, %v436
    %v439 = vtanh.pop %v438
    %441 = vrot.lane.b32.xlu0 %v439, 64
    %v442 = vpop.permute.xlu0 %441
    %v444 = vmul.f32 %v426, %v442
    %s445 = scalar_lea.vmem [#allocation2], 6
    %v446 = vld [vmem:[%s445] sm:$0x3]
    %448 = vrot.lane.b32.xlu0 %v444, 32
    %v449 = vpop.permute.xlu0 %448
    %v450 = vsel %vm142, %v449, 0
    %452 = vmatprep.subr.mxu0 0.0
    %453 = vmatpush1.msra.mxu0 0.0
    %454 = vmatprep.subr.mxu0 0.0
    %455 = vmatpush1.msra.mxu0 0.0
    %456 = vmatprep.subr.mxu0 0.0
    %457 = vmatpush1.msra.mxu0 0.0
    %458 = vmatprep.subr.mxu0 0.0
    %459 = vmatpush1.msra.mxu0 0.0
    %460 = vmatprep.subr.mxu0 0.0
    %461 = vmatpush1.msra.mxu0 0.0
    %462 = vmatprep.subr.mxu0 0.0
    %463 = vmatpush1.msra.mxu0 0.0
    %464 = vmatprep.subr.mxu0 0.0
    %465 = vmatpush1.msra.mxu0 0.0
    %466 = vmatprep.subr.mxu0 0.0
    %467 = vmatpush1.msra.mxu0 0.0
    %468 = vmatprep.subr.mxu0 0.0
    %469 = vmatpush1.msra.mxu0 0.0
    %470 = vmatprep.subr.mxu0 0.0
    %471 = vmatpush1.msra.mxu0 0.0
    %472 = vmatprep.subr.mxu0 0.0
    %473 = vmatpush1.msra.mxu0 0.0
    %474 = vmatprep.subr.mxu0 0.0
    %475 = vmatpush1.msra.mxu0 0.0
    %476 = vmatprep.subr.mxu0 0.0
    %477 = vmatpush1.msra.mxu0 %v140
    %478 = vmatprep.subr.mxu0 0.0
    %479 = vmatpush1.msra.mxu0 %v139
    %480 = vmatprep.subr.mxu0 0.0
    %481 = vmatpush1.msra.mxu0 %v138
    %482 = vmatprep.subr.mxu0 0.0
    %483 = vmatpush1.msra.mxu0 %v137
    %484 = vmatprep.subr.mxu0 0.0
    %485 = vmatpush2.msra.mxu0 0.0
    %486 = vmatprep.subr.mxu0 0.0
    %487 = vmatpush2.msra.mxu0 0.0
    %488 = vmatprep.subr.mxu0 0.0
    %489 = vmatpush2.msra.mxu0 0.0
    %490 = vmatprep.subr.mxu0 0.0
    %491 = vmatpush2.msra.mxu0 0.0
    %492 = vmatprep.subr.mxu0 0.0
    %493 = vmatpush2.msra.mxu0 0.0
    %494 = vmatprep.subr.mxu0 0.0
    %495 = vmatpush2.msra.mxu0 0.0
    %496 = vmatprep.subr.mxu0 0.0
    %497 = vmatpush2.msra.mxu0 0.0
    %498 = vmatprep.subr.mxu0 0.0
    %499 = vmatpush2.msra.mxu0 0.0
    %500 = vmatprep.subr.mxu0 0.0
    %501 = vmatpush2.msra.mxu0 0.0
    %502 = vmatprep.subr.mxu0 0.0
    %503 = vmatpush2.msra.mxu0 0.0
    %504 = vmatprep.subr.mxu0 0.0
    %505 = vmatpush2.msra.mxu0 0.0
    %506 = vmatprep.subr.mxu0 0.0
    %507 = vmatpush2.msra.mxu0 0.0
    %508 = vmatprep.subr.mxu0 0.0
    %509 = vmatpush2.msra.mxu0 0.0
    %510 = vmatprep.subr.mxu0 0.0
    %511 = vmatpush2.msra.mxu0 0.0
    %512 = vmatprep.subr.mxu0 0.0
    %513 = vmatpush2.msra.mxu0 0.0
    %514 = vmatprep.subr.mxu0 0.0
    %515 = vmatpush2.msra.mxu0 0.0
    %516 = vmatprep.mubr.f32.mxu0 0.0
    %517 = vmatmul.mubr.f32.gmra.mxu0 %v450
    %v518 = vpop.f32.mrf.mxu0
    %v519 = vadd.f32 0.0, %v518
    %v520 = vpop.f32.mrf.mxu0
    %521 = vdwg.mxu0
    %v522 = vadd.f32 %v446, %v519
    %v523 = vxor.u32 %v522, 2147483648
    %v524 = vmul.f32 %v523, 1.442695
    %v525 = vpow.pop %v524
    %v526 = vadd.f32 %v525, 1.0
    %v527 = vrcp.pop %v526
    %v528 = vmul.f32 1.0, %v527
    %v529 = vtanh.pop %v522
    %v530 = vmul.f32 %v528, %v438
    %532 = vrot.lane.b32.xlu0 %v529, 64
    %v533 = vpop.permute.xlu0 %532
    %v535 = vmul.f32 %v528, %v533
    %537 = vrot.lane.b32.xlu0 %v535, 32
    %v538 = vpop.permute.xlu0 %537
    %v540 = vadd.f32 %v530, %v538
    %v541 = vtanh.pop %v540
    %543 = vrot.lane.b32.xlu0 %v541, 64
    %v544 = vpop.permute.xlu0 %543
    %v546 = vmul.f32 %v528, %v544
    %s547 = scalar_lea.vmem [#allocation2], 8
    %v548 = vld [vmem:[%s547] sm:$0x3]
    %550 = vrot.lane.b32.xlu0 %v546, 32
    %v551 = vpop.permute.xlu0 %550
    %v552 = vsel %vm142, %v551, 0
    %554 = vmatprep.subr.mxu0 0.0
    %555 = vmatpush1.msra.mxu0 0.0
    %556 = vmatprep.subr.mxu0 0.0
    %557 = vmatpush1.msra.mxu0 0.0
    %558 = vmatprep.subr.mxu0 0.0
    %559 = vmatpush1.msra.mxu0 0.0
    %560 = vmatprep.subr.mxu0 0.0
    %561 = vmatpush1.msra.mxu0 0.0
    %562 = vmatprep.subr.mxu0 0.0
    %563 = vmatpush1.msra.mxu0 0.0
    %564 = vmatprep.subr.mxu0 0.0
    %565 = vmatpush1.msra.mxu0 0.0
    %566 = vmatprep.subr.mxu0 0.0
    %567 = vmatpush1.msra.mxu0 0.0
    %568 = vmatprep.subr.mxu0 0.0
    %569 = vmatpush1.msra.mxu0 0.0
    %570 = vmatprep.subr.mxu0 0.0
    %571 = vmatpush1.msra.mxu0 0.0
    %572 = vmatprep.subr.mxu0 0.0
    %573 = vmatpush1.msra.mxu0 0.0
    %574 = vmatprep.subr.mxu0 0.0
    %575 = vmatpush1.msra.mxu0 0.0
    %576 = vmatprep.subr.mxu0 0.0
    %577 = vmatpush1.msra.mxu0 0.0
    %578 = vmatprep.subr.mxu0 0.0
    %579 = vmatpush1.msra.mxu0 %v140
    %580 = vmatprep.subr.mxu0 0.0
    %581 = vmatpush1.msra.mxu0 %v139
    %582 = vmatprep.subr.mxu0 0.0
    %583 = vmatpush1.msra.mxu0 %v138
    %584 = vmatprep.subr.mxu0 0.0
    %585 = vmatpush1.msra.mxu0 %v137
    %586 = vmatprep.subr.mxu0 0.0
    %587 = vmatpush2.msra.mxu0 0.0
    %588 = vmatprep.subr.mxu0 0.0
    %589 = vmatpush2.msra.mxu0 0.0
    %590 = vmatprep.subr.mxu0 0.0
    %591 = vmatpush2.msra.mxu0 0.0
    %592 = vmatprep.subr.mxu0 0.0
    %593 = vmatpush2.msra.mxu0 0.0
    %594 = vmatprep.subr.mxu0 0.0
    %595 = vmatpush2.msra.mxu0 0.0
    %596 = vmatprep.subr.mxu0 0.0
    %597 = vmatpush2.msra.mxu0 0.0
    %598 = vmatprep.subr.mxu0 0.0
    %599 = vmatpush2.msra.mxu0 0.0
    %600 = vmatprep.subr.mxu0 0.0
    %601 = vmatpush2.msra.mxu0 0.0
    %602 = vmatprep.subr.mxu0 0.0
    %603 = vmatpush2.msra.mxu0 0.0
    %604 = vmatprep.subr.mxu0 0.0
    %605 = vmatpush2.msra.mxu0 0.0
    %606 = vmatprep.subr.mxu0 0.0
    %607 = vmatpush2.msra.mxu0 0.0
    %608 = vmatprep.subr.mxu0 0.0
    %609 = vmatpush2.msra.mxu0 0.0
    %610 = vmatprep.subr.mxu0 0.0
    %611 = vmatpush2.msra.mxu0 0.0
    %612 = vmatprep.subr.mxu0 0.0
    %613 = vmatpush2.msra.mxu0 0.0
    %614 = vmatprep.subr.mxu0 0.0
    %615 = vmatpush2.msra.mxu0 0.0
    %616 = vmatprep.subr.mxu0 0.0
    %617 = vmatpush2.msra.mxu0 0.0
    %618 = vmatprep.mubr.f32.mxu0 0.0
    %619 = vmatmul.mubr.f32.gmra.mxu0 %v552
    %v620 = vpop.f32.mrf.mxu0
    %v621 = vadd.f32 0.0, %v620
    %v622 = vpop.f32.mrf.mxu0
    %623 = vdwg.mxu0
    %v624 = vadd.f32 %v548, %v621
    %v625 = vxor.u32 %v624, 2147483648
    %v626 = vmul.f32 %v625, 1.442695
    %v627 = vpow.pop %v626
    %v628 = vadd.f32 %v627, 1.0
    %v629 = vrcp.pop %v628
    %v630 = vmul.f32 1.0, %v629
    %v631 = vtanh.pop %v624
    %v632 = vmul.f32 %v630, %v540
    %634 = vrot.lane.b32.xlu0 %v631, 64
    %v635 = vpop.permute.xlu0 %634
    %v637 = vmul.f32 %v630, %v635
    %639 = vrot.lane.b32.xlu0 %v637, 32
    %v640 = vpop.permute.xlu0 %639
    %v642 = vadd.f32 %v632, %v640
    %v643 = vtanh.pop %v642
    %645 = vrot.lane.b32.xlu0 %v643, 64
    %v646 = vpop.permute.xlu0 %645
    %v648 = vmul.f32 %v630, %v646
    %s649 = scalar_lea.vmem [#allocation2], 10
    %v650 = vld [vmem:[%s649] sm:$0x3]
    %652 = vrot.lane.b32.xlu0 %v648, 32
    %v653 = vpop.permute.xlu0 %652
    %v654 = vsel %vm142, %v653, 0
    %656 = vmatprep.subr.mxu0 0.0
    %657 = vmatpush1.msra.mxu0 0.0
    %658 = vmatprep.subr.mxu0 0.0
    %659 = vmatpush1.msra.mxu0 0.0
    %660 = vmatprep.subr.mxu0 0.0
    %661 = vmatpush1.msra.mxu0 0.0
    %662 = vmatprep.subr.mxu0 0.0
    %663 = vmatpush1.msra.mxu0 0.0
    %664 = vmatprep.subr.mxu0 0.0
    %665 = vmatpush1.msra.mxu0 0.0
    %666 = vmatprep.subr.mxu0 0.0
    %667 = vmatpush1.msra.mxu0 0.0
    %668 = vmatprep.subr.mxu0 0.0
    %669 = vmatpush1.msra.mxu0 0.0
    %670 = vmatprep.subr.mxu0 0.0
    %671 = vmatpush1.msra.mxu0 0.0
    %672 = vmatprep.subr.mxu0 0.0
    %673 = vmatpush1.msra.mxu0 0.0
    %674 = vmatprep.subr.mxu0 0.0
    %675 = vmatpush1.msra.mxu0 0.0
    %676 = vmatprep.subr.mxu0 0.0
    %677 = vmatpush1.msra.mxu0 0.0
    %678 = vmatprep.subr.mxu0 0.0
    %679 = vmatpush1.msra.mxu0 0.0
    %680 = vmatprep.subr.mxu0 0.0
    %681 = vmatpush1.msra.mxu0 %v140
    %682 = vmatprep.subr.mxu0 0.0
    %683 = vmatpush1.msra.mxu0 %v139
    %684 = vmatprep.subr.mxu0 0.0
    %685 = vmatpush1.msra.mxu0 %v138
    %686 = vmatprep.subr.mxu0 0.0
    %687 = vmatpush1.msra.mxu0 %v137
    %688 = vmatprep.subr.mxu0 0.0
    %689 = vmatpush2.msra.mxu0 0.0
    %690 = vmatprep.subr.mxu0 0.0
    %691 = vmatpush2.msra.mxu0 0.0
    %692 = vmatprep.subr.mxu0 0.0
    %693 = vmatpush2.msra.mxu0 0.0
    %694 = vmatprep.subr.mxu0 0.0
    %695 = vmatpush2.msra.mxu0 0.0
    %696 = vmatprep.subr.mxu0 0.0
    %697 = vmatpush2.msra.mxu0 0.0
    %698 = vmatprep.subr.mxu0 0.0
    %699 = vmatpush2.msra.mxu0 0.0
    %700 = vmatprep.subr.mxu0 0.0
    %701 = vmatpush2.msra.mxu0 0.0
    %702 = vmatprep.subr.mxu0 0.0
    %703 = vmatpush2.msra.mxu0 0.0
    %704 = vmatprep.subr.mxu0 0.0
    %705 = vmatpush2.msra.mxu0 0.0
    %706 = vmatprep.subr.mxu0 0.0
    %707 = vmatpush2.msra.mxu0 0.0
    %708 = vmatprep.subr.mxu0 0.0
    %709 = vmatpush2.msra.mxu0 0.0
    %710 = vmatprep.subr.mxu0 0.0
    %711 = vmatpush2.msra.mxu0 0.0
    %712 = vmatprep.subr.mxu0 0.0
    %713 = vmatpush2.msra.mxu0 0.0
    %714 = vmatprep.subr.mxu0 0.0
    %715 = vmatpush2.msra.mxu0 0.0
    %716 = vmatprep.subr.mxu0 0.0
    %717 = vmatpush2.msra.mxu0 0.0
    %718 = vmatprep.subr.mxu0 0.0
    %719 = vmatpush2.msra.mxu0 0.0
    %720 = vmatprep.mubr.f32.mxu0 0.0
    %721 = vmatmul.mubr.f32.gmra.mxu0 %v654
    %v722 = vpop.f32.mrf.mxu0
    %v723 = vadd.f32 0.0, %v722
    %v724 = vpop.f32.mrf.mxu0
    %725 = vdwg.mxu0
    %v726 = vadd.f32 %v650, %v723
    %v727 = vxor.u32 %v726, 2147483648
    %v728 = vmul.f32 %v727, 1.442695
    %v729 = vpow.pop %v728
    %v730 = vadd.f32 %v729, 1.0
    %v731 = vrcp.pop %v730
    %v732 = vmul.f32 1.0, %v731
    %v733 = vtanh.pop %v726
    %v734 = vmul.f32 %v732, %v642
    %736 = vrot.lane.b32.xlu0 %v733, 64
    %v737 = vpop.permute.xlu0 %736
    %v739 = vmul.f32 %v732, %v737
    %741 = vrot.lane.b32.xlu0 %v739, 32
    %v742 = vpop.permute.xlu0 %741
    %v744 = vadd.f32 %v734, %v742
    %v745 = vtanh.pop %v744
    %747 = vrot.lane.b32.xlu0 %v745, 64
    %v748 = vpop.permute.xlu0 %747
    %v750 = vmul.f32 %v732, %v748
    %s751 = scalar_lea.vmem [#allocation2], 12
    %v752 = vld [vmem:[%s751] sm:$0x3]
    %754 = vrot.lane.b32.xlu0 %v750, 32
    %v755 = vpop.permute.xlu0 %754
    %v756 = vsel %vm142, %v755, 0
    %758 = vmatprep.subr.mxu0 0.0
    %759 = vmatpush1.msra.mxu0 0.0
    %760 = vmatprep.subr.mxu0 0.0
    %761 = vmatpush1.msra.mxu0 0.0
    %762 = vmatprep.subr.mxu0 0.0
    %763 = vmatpush1.msra.mxu0 0.0
    %764 = vmatprep.subr.mxu0 0.0
    %765 = vmatpush1.msra.mxu0 0.0
    %766 = vmatprep.subr.mxu0 0.0
    %767 = vmatpush1.msra.mxu0 0.0
    %768 = vmatprep.subr.mxu0 0.0
    %769 = vmatpush1.msra.mxu0 0.0
    %770 = vmatprep.subr.mxu0 0.0
    %771 = vmatpush1.msra.mxu0 0.0
    %772 = vmatprep.subr.mxu0 0.0
    %773 = vmatpush1.msra.mxu0 0.0
    %774 = vmatprep.subr.mxu0 0.0
    %775 = vmatpush1.msra.mxu0 0.0
    %776 = vmatprep.subr.mxu0 0.0
    %777 = vmatpush1.msra.mxu0 0.0
    %778 = vmatprep.subr.mxu0 0.0
    %779 = vmatpush1.msra.mxu0 0.0
    %780 = vmatprep.subr.mxu0 0.0
    %781 = vmatpush1.msra.mxu0 0.0
    %782 = vmatprep.subr.mxu0 0.0
    %783 = vmatpush1.msra.mxu0 %v140
    %784 = vmatprep.subr.mxu0 0.0
    %785 = vmatpush1.msra.mxu0 %v139
    %786 = vmatprep.subr.mxu0 0.0
    %787 = vmatpush1.msra.mxu0 %v138
    %788 = vmatprep.subr.mxu0 0.0
    %789 = vmatpush1.msra.mxu0 %v137
    %790 = vmatprep.subr.mxu0 0.0
    %791 = vmatpush2.msra.mxu0 0.0
    %792 = vmatprep.subr.mxu0 0.0
    %793 = vmatpush2.msra.mxu0 0.0
    %794 = vmatprep.subr.mxu0 0.0
    %795 = vmatpush2.msra.mxu0 0.0
    %796 = vmatprep.subr.mxu0 0.0
    %797 = vmatpush2.msra.mxu0 0.0
    %798 = vmatprep.subr.mxu0 0.0
    %799 = vmatpush2.msra.mxu0 0.0
    %800 = vmatprep.subr.mxu0 0.0
    %801 = vmatpush2.msra.mxu0 0.0
    %802 = vmatprep.subr.mxu0 0.0
    %803 = vmatpush2.msra.mxu0 0.0
    %804 = vmatprep.subr.mxu0 0.0
    %805 = vmatpush2.msra.mxu0 0.0
    %806 = vmatprep.subr.mxu0 0.0
    %807 = vmatpush2.msra.mxu0 0.0
    %808 = vmatprep.subr.mxu0 0.0
    %809 = vmatpush2.msra.mxu0 0.0
    %810 = vmatprep.subr.mxu0 0.0
    %811 = vmatpush2.msra.mxu0 0.0
    %812 = vmatprep.subr.mxu0 0.0
    %813 = vmatpush2.msra.mxu0 0.0
    %814 = vmatprep.subr.mxu0 0.0
    %815 = vmatpush2.msra.mxu0 0.0
    %816 = vmatprep.subr.mxu0 0.0
    %817 = vmatpush2.msra.mxu0 0.0
    %818 = vmatprep.subr.mxu0 0.0
    %819 = vmatpush2.msra.mxu0 0.0
    %820 = vmatprep.subr.mxu0 0.0
    %821 = vmatpush2.msra.mxu0 0.0
    %822 = vmatprep.mubr.f32.mxu0 0.0
    %823 = vmatmul.mubr.f32.gmra.mxu0 %v756
    %v824 = vpop.f32.mrf.mxu0
    %v825 = vadd.f32 0.0, %v824
    %v826 = vpop.f32.mrf.mxu0
    %827 = vdwg.mxu0
    %v828 = vadd.f32 %v752, %v825
    %v829 = vxor.u32 %v828, 2147483648
    %v830 = vmul.f32 %v829, 1.442695
    %v831 = vpow.pop %v830
    %v832 = vadd.f32 %v831, 1.0
    %v833 = vrcp.pop %v832
    %v834 = vmul.f32 1.0, %v833
    %v835 = vtanh.pop %v828
    %v836 = vmul.f32 %v834, %v744
    %838 = vrot.lane.b32.xlu0 %v835, 64
    %v839 = vpop.permute.xlu0 %838
    %v841 = vmul.f32 %v834, %v839
    %843 = vrot.lane.b32.xlu0 %v841, 32
    %v844 = vpop.permute.xlu0 %843
    %v846 = vadd.f32 %v836, %v844
    %v847 = vtanh.pop %v846
    %849 = vrot.lane.b32.xlu0 %v847, 64
    %v850 = vpop.permute.xlu0 %849
    %v852 = vmul.f32 %v834, %v850
    %s853 = scalar_lea.vmem [#allocation2], 14
    %v854 = vld [vmem:[%s853] sm:$0x3]
    %856 = vrot.lane.b32.xlu0 %v852, 32
    %v857 = vpop.permute.xlu0 %856
    %v858 = vsel %vm142, %v857, 0
    %860 = vmatprep.subr.mxu0 0.0
    %861 = vmatpush1.msra.mxu0 0.0
    %862 = vmatprep.subr.mxu0 0.0
    %863 = vmatpush1.msra.mxu0 0.0
    %864 = vmatprep.subr.mxu0 0.0
    %865 = vmatpush1.msra.mxu0 0.0
    %866 = vmatprep.subr.mxu0 0.0
    %867 = vmatpush1.msra.mxu0 0.0
    %868 = vmatprep.subr.mxu0 0.0
    %869 = vmatpush1.msra.mxu0 0.0
    %870 = vmatprep.subr.mxu0 0.0
    %871 = vmatpush1.msra.mxu0 0.0
    %872 = vmatprep.subr.mxu0 0.0
    %873 = vmatpush1.msra.mxu0 0.0
    %874 = vmatprep.subr.mxu0 0.0
    %875 = vmatpush1.msra.mxu0 0.0
    %876 = vmatprep.subr.mxu0 0.0
    %877 = vmatpush1.msra.mxu0 0.0
    %878 = vmatprep.subr.mxu0 0.0
    %879 = vmatpush1.msra.mxu0 0.0
    %880 = vmatprep.subr.mxu0 0.0
    %881 = vmatpush1.msra.mxu0 0.0
    %882 = vmatprep.subr.mxu0 0.0
    %883 = vmatpush1.msra.mxu0 0.0
    %884 = vmatprep.subr.mxu0 0.0
    %885 = vmatpush1.msra.mxu0 %v140
    %886 = vmatprep.subr.mxu0 0.0
    %887 = vmatpush1.msra.mxu0 %v139
    %888 = vmatprep.subr.mxu0 0.0
    %889 = vmatpush1.msra.mxu0 %v138
    %890 = vmatprep.subr.mxu0 0.0
    %891 = vmatpush1.msra.mxu0 %v137
    %892 = vmatprep.subr.mxu0 0.0
    %893 = vmatpush2.msra.mxu0 0.0
    %894 = vmatprep.subr.mxu0 0.0
    %895 = vmatpush2.msra.mxu0 0.0
    %896 = vmatprep.subr.mxu0 0.0
    %897 = vmatpush2.msra.mxu0 0.0
    %898 = vmatprep.subr.mxu0 0.0
    %899 = vmatpush2.msra.mxu0 0.0
    %900 = vmatprep.subr.mxu0 0.0
    %901 = vmatpush2.msra.mxu0 0.0
    %902 = vmatprep.subr.mxu0 0.0
    %903 = vmatpush2.msra.mxu0 0.0
    %904 = vmatprep.subr.mxu0 0.0
    %905 = vmatpush2.msra.mxu0 0.0
    %906 = vmatprep.subr.mxu0 0.0
    %907 = vmatpush2.msra.mxu0 0.0
    %908 = vmatprep.subr.mxu0 0.0
    %909 = vmatpush2.msra.mxu0 0.0
    %910 = vmatprep.subr.mxu0 0.0
    %911 = vmatpush2.msra.mxu0 0.0
    %912 = vmatprep.subr.mxu0 0.0
    %913 = vmatpush2.msra.mxu0 0.0
    %914 = vmatprep.subr.mxu0 0.0
    %915 = vmatpush2.msra.mxu0 0.0
    %916 = vmatprep.subr.mxu0 0.0
    %917 = vmatpush2.msra.mxu0 0.0
    %918 = vmatprep.subr.mxu0 0.0
    %919 = vmatpush2.msra.mxu0 0.0
    %920 = vmatprep.subr.mxu0 0.0
    %921 = vmatpush2.msra.mxu0 0.0
    %922 = vmatprep.subr.mxu0 0.0
    %923 = vmatpush2.msra.mxu0 0.0
    %924 = vmatprep.mubr.f32.mxu0 0.0
    %925 = vmatmul.mubr.f32.gmra.mxu0 %v858
    %v926 = vpop.f32.mrf.mxu0
    %v927 = vadd.f32 0.0, %v926
    %v928 = vpop.f32.mrf.mxu0
    %929 = vdwg.mxu0
    %v930 = vadd.f32 %v854, %v927
    %v931 = vxor.u32 %v930, 2147483648
    %v932 = vmul.f32 %v931, 1.442695
    %v933 = vpow.pop %v932
    %v934 = vadd.f32 %v933, 1.0
    %v935 = vrcp.pop %v934
    %v936 = vmul.f32 1.0, %v935
    %v937 = vtanh.pop %v930
    %v938 = vmul.f32 %v936, %v846
    %940 = vrot.lane.b32.xlu0 %v937, 64
    %v941 = vpop.permute.xlu0 %940
    %v943 = vmul.f32 %v936, %v941
    %945 = vrot.lane.b32.xlu0 %v943, 32
    %v946 = vpop.permute.xlu0 %945
    %v948 = vadd.f32 %v938, %v946
    %v949 = vtanh.pop %v948
    %951 = vrot.lane.b32.xlu0 %v949, 64
    %v952 = vpop.permute.xlu0 %951
    %v954 = vmul.f32 %v936, %v952
    %v955 = vld [vmem:[#allocation5] sm:$0xff]
    %v956 = vld [vmem:[#allocation5 + $0x8] sm:$0xff]
    %v957 = vld [vmem:[#allocation5 + $0x10] sm:$0xff]
    %v958 = vld [vmem:[#allocation5 + $0x18] sm:$0xff]
    %v959 = vld [vmem:[%s5] sm:$0x1]
    %v961 = vlaneseq
    %v962 = vshrl.u32 %v961, 7
    %v963 = vsub.s32 0, %v962
    %v964 = vrot.slane %v959, %v963
    %967 = vrot.lane.b32.xlu0 %v954, 32
    %v968 = vpop.permute.xlu0 %967
    %v969 = vsel %vm142, %v968, 0
    %971 = vmatprep.subr.mxu0 0.0
    %972 = vmatpush1.msra.mxu0 0.0
    %973 = vmatprep.subr.mxu0 0.0
    %974 = vmatpush1.msra.mxu0 0.0
    %975 = vmatprep.subr.mxu0 0.0
    %976 = vmatpush1.msra.mxu0 0.0
    %977 = vmatprep.subr.mxu0 0.0
    %978 = vmatpush1.msra.mxu0 0.0
    %979 = vmatprep.subr.mxu0 0.0
    %980 = vmatpush1.msra.mxu0 0.0
    %981 = vmatprep.subr.mxu0 0.0
    %982 = vmatpush1.msra.mxu0 0.0
    %983 = vmatprep.subr.mxu0 0.0
    %984 = vmatpush1.msra.mxu0 0.0
    %985 = vmatprep.subr.mxu0 0.0
    %986 = vmatpush1.msra.mxu0 0.0
    %987 = vmatprep.subr.mxu0 0.0
    %988 = vmatpush1.msra.mxu0 0.0
    %989 = vmatprep.subr.mxu0 0.0
    %990 = vmatpush1.msra.mxu0 0.0
    %991 = vmatprep.subr.mxu0 0.0
    %992 = vmatpush1.msra.mxu0 0.0
    %993 = vmatprep.subr.mxu0 0.0
    %994 = vmatpush1.msra.mxu0 0.0
    %995 = vmatprep.subr.mxu0 0.0
    %996 = vmatpush1.msra.mxu0 %v958
    %997 = vmatprep.subr.mxu0 0.0
    %998 = vmatpush1.msra.mxu0 %v957
    %999 = vmatprep.subr.mxu0 0.0
    %1000 = vmatpush1.msra.mxu0 %v956
    %1001 = vmatprep.subr.mxu0 0.0
    %1002 = vmatpush1.msra.mxu0 %v955
    %1003 = vmatprep.subr.mxu0 0.0
    %1004 = vmatpush2.msra.mxu0 0.0
    %1005 = vmatprep.subr.mxu0 0.0
    %1006 = vmatpush2.msra.mxu0 0.0
    %1007 = vmatprep.subr.mxu0 0.0
    %1008 = vmatpush2.msra.mxu0 0.0
    %1009 = vmatprep.subr.mxu0 0.0
    %1010 = vmatpush2.msra.mxu0 0.0
    %1011 = vmatprep.subr.mxu0 0.0
    %1012 = vmatpush2.msra.mxu0 0.0
    %1013 = vmatprep.subr.mxu0 0.0
    %1014 = vmatpush2.msra.mxu0 0.0
    %1015 = vmatprep.subr.mxu0 0.0
    %1016 = vmatpush2.msra.mxu0 0.0
    %1017 = vmatprep.subr.mxu0 0.0
    %1018 = vmatpush2.msra.mxu0 0.0
    %1019 = vmatprep.subr.mxu0 0.0
    %1020 = vmatpush2.msra.mxu0 0.0
    %1021 = vmatprep.subr.mxu0 0.0
    %1022 = vmatpush2.msra.mxu0 0.0
    %1023 = vmatprep.subr.mxu0 0.0
    %1024 = vmatpush2.msra.mxu0 0.0
    %1025 = vmatprep.subr.mxu0 0.0
    %1026 = vmatpush2.msra.mxu0 0.0
    %1027 = vmatprep.subr.mxu0 0.0
    %1028 = vmatpush2.msra.mxu0 0.0
    %1029 = vmatprep.subr.mxu0 0.0
    %1030 = vmatpush2.msra.mxu0 0.0
    %1031 = vmatprep.subr.mxu0 0.0
    %1032 = vmatpush2.msra.mxu0 0.0
    %1033 = vmatprep.subr.mxu0 0.0
    %1034 = vmatpush2.msra.mxu0 0.0
    %1035 = vmatprep.mubr.f32.mxu0 0.0
    %1036 = vmatmul.mubr.f32.gmra.mxu0 %v969
    %v1037 = vpop.f32.mrf.mxu0
    %v1038 = vadd.f32 %v964, %v1037
    %v1039 = vpop.f32.mrf.mxu0
    %1040 = vdwg.mxu0
    %1041 = vst [vmem:[%s6] sm:$0x3] %v1038
    // Predicated region
    $region34: #{lstm_model_forward.1} parent=1 // pred_check
      _
    $region35: #{lstm_model_forward.1} parent=1 // pred_check_branch
      %1043 = sbr.rel (0) target = $region37
    $region36: #{lstm_model_forward.1} parent=1 // pred_region
      _
    $region37: #{lstm_model_forward.1} parent=1 // pred_fallthru
      _
    // Predicated region
    $region38: #{lstm_model_forward.1} parent=1 // pred_check
      _
    $region39: #{lstm_model_forward.1} parent=1 // pred_check_branch
      %1045 = sbr.rel (0) target = $region41
    $region40: #{lstm_model_forward.1} parent=1 // pred_region
      _
    $region41: #{lstm_model_forward.1} parent=1 // pred_fallthru
      _
    %1046 = vsyncpa [#allocation4], 1
    %1047 = vsyncpa [#allocation6], 1

</llo_original>
